<compile_context>
chip_gen: v7x
topology: tpu7x:2x2x1
jax: 0.10.0
libtpu: 0.0.40
codegen_flags: <defaults>
</compile_context>

<pallas_src>
import jax
import jax.numpy as jnp
from jax.experimental import pallas as pl
from jax.experimental.pallas import tpu as pltpu


def _leaky_relu(v, slope=0.2):
    # nn.LeakyReLU(0.2)
    return jnp.where(v >= 0, v, slope * v)


def _round_up(n, m):
    return ((n + m - 1) // m) * m


def _res_block_kernel(x_ref, w1_ref, b1_ref, w2_ref, b2_ref, o_ref):
    # Keep the activation stream in f32 (exact residual / bias / LeakyReLU);
    # only the MXU operands are cast to the weight dtype (bf16 by default).
    x = x_ref[...].astype(jnp.float32)
    mxu_dtype = w1_ref.dtype

    # fc1 + LeakyReLU(0.2)   (f32 accumulation on the MXU)
    h = jnp.dot(x.astype(mxu_dtype), w1_ref[...],
                preferred_element_type=jnp.float32) + b1_ref[...]
    h = _leaky_relu(h)

    # fc2
    out = jnp.dot(h.astype(mxu_dtype), w2_ref[...],
                  preferred_element_type=jnp.float32) + b2_ref[...]

    # residual add + LeakyReLU(0.2); lane-dense store (last dim = hidden)
    o_ref[...] = _leaky_relu(out + x).astype(o_ref.dtype)


def init_params(key, hidden_size):
    """Matches PyTorch nn.Linear default init; weights stored as (in, out)."""
    k1, k2 = jax.random.split(key)

    def lin(k, fan_in, fan_out):
        bound = 1.0 / jnp.sqrt(fan_in)
        kw, kb = jax.random.split(k)
        w = jax.random.uniform(kw, (fan_in, fan_out), jnp.float32, -bound, bound)
        b = jax.random.uniform(kb, (1, fan_out), jnp.float32, -bound, bound)
        return w, b

    w1, b1 = lin(k1, hidden_size, hidden_size)
    w2, b2 = lin(k2, hidden_size, hidden_size)
    return dict(w1=w1, b1=b1, w2=w2, b2=b2)


def _pick_row_tile(M, requested, align):
    """Row tile: aligned to `align` sublanes, <= requested, and capped so the
    grid has >= 2 steps whenever M allows (v7x megacore + pipelining)."""
    tm = min(_round_up(requested, align), _round_up(M, align))
    if M > align:
        tm = min(tm, _round_up(pl.cdiv(M, 2), align))
    return max(align, tm)


def mlp_residual_block(x, params, *, tm=512, mxu_dtype=jnp.bfloat16):
    """x: (..., hidden) -> (..., hidden), same semantics as MLPResidualBlock.

    mxu_dtype=jnp.bfloat16 (default) feeds bf16 operands to the MXU with f32
    accumulation; pass jnp.float32 for exact parity with the f32 module.
    """
    hidden = x.shape[-1]
    lead_shape = x.shape[:-1]
    x2 = x.reshape(-1, hidden)
    M = x2.shape[0]

    # Sublane alignment is dtype dependent (f32: 8, bf16: 16, int8/fp8: 32).
    align = {4: 8, 2: 16, 1: 32}.get(x2.dtype.itemsize, 8)
    tm = _pick_row_tile(M, tm, align)
    # Partial last block handled by Pallas (masked output store) -- no host pad.
    grid = (pl.cdiv(M, tm),)

    # Pre-cast weights once (halves their HBM/VMEM footprint for bf16).
    w1 = params["w1"].astype(mxu_dtype)
    w2 = params["w2"].astype(mxu_dtype)
    b1 = params["b1"].astype(jnp.float32)
    b2 = params["b2"].astype(jnp.float32)

    # Grid-invariant operands: constant index_map -> fetched once, stay VMEM
    # resident across all row steps.
    weight = lambda shape: pl.BlockSpec(shape, lambda i: tuple(0 for _ in shape))

    w_itemsize = jnp.dtype(mxu_dtype).itemsize
    flops = 4 * M * hidden * hidden + 5 * M * hidden
    bytes_accessed = (
        2 * M * hidden * x2.dtype.itemsize          # x in, out
        + 2 * hidden * hidden * w_itemsize          # weights
        + 2 * hidden * 4                            # biases
    )

    # Explicit scoped-VMEM budget: double-buffered in/out blocks + weights,
    # with headroom; clamped to [32 MiB, 64 MiB] (safe on v5e/v6e/v7x).
    block_bytes = tm * hidden * x2.dtype.itemsize
    weight_bytes = 2 * hidden * hidden * w_itemsize + 2 * hidden * 4
    vmem_limit = int(min(64 * 2**20,
                         max(32 * 2**20,
                             4 * 2 * block_bytes + 2 * weight_bytes + (4 << 20))))

    out = pl.pallas_call(
        _res_block_kernel,
        out_shape=jax.ShapeDtypeStruct((M, hidden), x.dtype),
        grid_spec=pltpu.PrefetchScalarGridSpec(
            num_scalar_prefetch=0,
            grid=grid,
            in_specs=[
                pl.BlockSpec((tm, hidden), lambda i: (i, 0)),   # x rows
                weight((hidden, hidden)),                       # w1
                weight((1, hidden)),                            # b1
                weight((hidden, hidden)),                       # w2
                weight((1, hidden)),                            # b2
            ],
            out_specs=pl.BlockSpec((tm, hidden), lambda i: (i, 0)),
        ),
        compiler_params=pltpu.CompilerParams(
            dimension_semantics=("parallel",),
            vmem_limit_bytes=vmem_limit),
        cost_estimate=pl.CostEstimate(
            flops=flops, transcendentals=0, bytes_accessed=bytes_accessed),
    )(x2, w1, b1, w2, b2)

    return out.reshape(*lead_shape, hidden)


def reference_forward(x, params, mxu_dtype=jnp.float32):
    """Pure-JAX mirror of the PyTorch MLPResidualBlock forward.

    mxu_dtype=bf16 mirrors the kernel's bf16-operand / f32-accumulate matmuls.
    """
    w1 = params["w1"].astype(mxu_dtype)
    w2 = params["w2"].astype(mxu_dtype)
    h = jnp.dot(x.astype(mxu_dtype), w1,
                preferred_element_type=jnp.float32) + params["b1"][0]
    h = _leaky_relu(h)
    out = jnp.dot(h.astype(mxu_dtype), w2,
                  preferred_element_type=jnp.float32) + params["b2"][0]
    return _leaky_relu(out + x)


if __name__ == "__main__":
    # Small shapes consistent with the module: x = (batch, seq, hidden).
    # M = 150 rows -> 2 grid steps with a partial tail block (exercises the
    # no-host-padding path).
    batch, seq, hidden = 3, 50, 128

    key = jax.random.PRNGKey(0)
    kx, kp = jax.random.split(key)
    x = jax.random.normal(kx, (batch, seq, hidden), jnp.float32)
    params = init_params(kp, hidden)

    y = jax.block_until_ready(mlp_residual_block(x, params))
    assert y.shape == (batch, seq, hidden)

    # Tight check vs a reference using the same bf16 MXU operands.
    y_ref_bf16 = reference_forward(x, params, mxu_dtype=jnp.bfloat16)
    assert jnp.allclose(y, y_ref_bf16, atol=1e-2, rtol=1e-2)

    # Semantic parity with the f32 PyTorch module (bf16 operands -> looser tol).
    y_ref_f32 = reference_forward(x, params, mxu_dtype=jnp.float32)
    assert jnp.allclose(y, y_ref_f32, atol=1e-1, rtol=1e-1)

    print("KERNEL_OK")
</pallas_src>

<mosaic_0001>
module attributes {stable_mosaic.version = 11 : i64} {
  func.func @_res_block_kernel(%arg0: i32, %arg1: memref<80x128xf32, #tpu.memory_space<vmem>>, %arg2: memref<128x128xbf16, #tpu.memory_space<vmem>>, %arg3: memref<1x128xf32, #tpu.memory_space<vmem>>, %arg4: memref<128x128xbf16, #tpu.memory_space<vmem>>, %arg5: memref<1x128xf32, #tpu.memory_space<vmem>>, %arg6: memref<80x128xf32, #tpu.memory_space<vmem>>) attributes {dimension_semantics = [#tpu.dimension_semantics<parallel>], iteration_bounds = array<i64: 2>, scalar_prefetch = 0 : i64, scratch_operands = 0 : i64, tpu.core_type = #tpu.core_type<tc>, window_params = [{transform_indices = @transform_0, window_bounds = array<i64: 80, 128>}, {pipeline_mode = #tpu.pipeline_mode<synchronous>, transform_indices = @transform_1, window_bounds = array<i64: 128, 128>}, {pipeline_mode = #tpu.pipeline_mode<synchronous>, transform_indices = @transform_2, window_bounds = array<i64: 1, 128>}, {pipeline_mode = #tpu.pipeline_mode<synchronous>, transform_indices = @transform_3, window_bounds = array<i64: 128, 128>}, {pipeline_mode = #tpu.pipeline_mode<synchronous>, transform_indices = @transform_4, window_bounds = array<i64: 1, 128>}, {transform_indices = @transform_5, window_bounds = array<i64: 80, 128>}]} {
    %c0 = arith.constant 0 : index
    %c0_0 = arith.constant 0 : index
    %0 = vector.load %arg1[%c0, %c0_0] : memref<80x128xf32, #tpu.memory_space<vmem>>, vector<80x128xf32>
    %1 = arith.truncf %0 : vector<80x128xf32> to vector<80x128xbf16>
    %c0_1 = arith.constant 0 : index
    %c0_2 = arith.constant 0 : index
    %2 = vector.load %arg2[%c0_1, %c0_2] : memref<128x128xbf16, #tpu.memory_space<vmem>>, vector<128x128xbf16>
    %cst = arith.constant dense<0.000000e+00> : vector<80x128xf32>
    %3 = tpu.matmul %1, %2, %cst {dimension_numbers = #tpu.dot_dimension_numbers<[1], [0], [0], [1], [0, 0, 1, 1], [], []>} : vector<80x128xbf16>, vector<128x128xbf16>, vector<80x128xf32> -> vector<80x128xf32>
    %c0_3 = arith.constant 0 : index
    %c0_4 = arith.constant 0 : index
    %4 = vector.load %arg3[%c0_3, %c0_4] : memref<1x128xf32, #tpu.memory_space<vmem>>, vector<1x128xf32>
    %5 = vector.broadcast %4 : vector<1x128xf32> to vector<80x128xf32>
    %6 = arith.addf %3, %5 : vector<80x128xf32>
    %cst_5 = arith.constant 0.000000e+00 : f32
    %7 = vector.broadcast %cst_5 : f32 to vector<80x128xf32>
    %8 = arith.cmpf oge, %6, %7 : vector<80x128xf32>
    %cst_6 = arith.constant 2.000000e-01 : f32
    %9 = vector.broadcast %cst_6 : f32 to vector<80x128xf32>
    %10 = arith.mulf %9, %6 : vector<80x128xf32>
    %11 = arith.select %8, %6, %10 : vector<80x128xi1>, vector<80x128xf32>
    %12 = arith.truncf %11 : vector<80x128xf32> to vector<80x128xbf16>
    %c0_7 = arith.constant 0 : index
    %c0_8 = arith.constant 0 : index
    %13 = vector.load %arg4[%c0_7, %c0_8] : memref<128x128xbf16, #tpu.memory_space<vmem>>, vector<128x128xbf16>
    %cst_9 = arith.constant dense<0.000000e+00> : vector<80x128xf32>
    %14 = tpu.matmul %12, %13, %cst_9 {dimension_numbers = #tpu.dot_dimension_numbers<[1], [0], [0], [1], [0, 0, 1, 1], [], []>} : vector<80x128xbf16>, vector<128x128xbf16>, vector<80x128xf32> -> vector<80x128xf32>
    %c0_10 = arith.constant 0 : index
    %c0_11 = arith.constant 0 : index
    %15 = vector.load %arg5[%c0_10, %c0_11] : memref<1x128xf32, #tpu.memory_space<vmem>>, vector<1x128xf32>
    %16 = vector.broadcast %15 : vector<1x128xf32> to vector<80x128xf32>
    %17 = arith.addf %14, %16 : vector<80x128xf32>
    %18 = arith.addf %17, %0 : vector<80x128xf32>
    %cst_12 = arith.constant 0.000000e+00 : f32
    %19 = vector.broadcast %cst_12 : f32 to vector<80x128xf32>
    %20 = arith.cmpf oge, %18, %19 : vector<80x128xf32>
    %cst_13 = arith.constant 2.000000e-01 : f32
    %21 = vector.broadcast %cst_13 : f32 to vector<80x128xf32>
    %22 = arith.mulf %21, %18 : vector<80x128xf32>
    %23 = arith.select %20, %18, %22 : vector<80x128xi1>, vector<80x128xf32>
    %c0_14 = arith.constant 0 : index
    %c0_15 = arith.constant 0 : index
    %24 = vector.load %arg6[%c0_14, %c0_15] : memref<80x128xf32, #tpu.memory_space<vmem>>, vector<80x128xf32>
    tpu.vector_store %arg6[%c0_14, %c0_15], %23 {strides = array<i32>} : memref<80x128xf32, #tpu.memory_space<vmem>>, vector<80x128xf32>,
    return
  }
  func.func @transform_0(%arg0: i32) -> (i32, i32) {
    %c0_i32 = arith.constant 0 : i32
    %c0_i32_0 = arith.constant 0 : i32
    return %arg0, %c0_i32 : i32, i32
  }
  func.func @transform_1(%arg0: i32) -> (i32, i32) {
    %c0_i32 = arith.constant 0 : i32
    %c0_i32_0 = arith.constant 0 : i32
    %c0_i32_1 = arith.constant 0 : i32
    return %c0_i32, %c0_i32_0 : i32, i32
  }
  func.func @transform_2(%arg0: i32) -> (i32, i32) {
    %c0_i32 = arith.constant 0 : i32
    %c0_i32_0 = arith.constant 0 : i32
    %c0_i32_1 = arith.constant 0 : i32
    return %c0_i32, %c0_i32_0 : i32, i32
  }
  func.func @transform_3(%arg0: i32) -> (i32, i32) {
    %c0_i32 = arith.constant 0 : i32
    %c0_i32_0 = arith.constant 0 : i32
    %c0_i32_1 = arith.constant 0 : i32
    return %c0_i32, %c0_i32_0 : i32, i32
  }
  func.func @transform_4(%arg0: i32) -> (i32, i32) {
    %c0_i32 = arith.constant 0 : i32
    %c0_i32_0 = arith.constant 0 : i32
    %c0_i32_1 = arith.constant 0 : i32
    return %c0_i32, %c0_i32_0 : i32, i32
  }
  func.func @transform_5(%arg0: i32) -> (i32, i32) {
    %c0_i32 = arith.constant 0 : i32
    %c0_i32_0 = arith.constant 0 : i32
    return %arg0, %c0_i32 : i32, i32
  }
}

</mosaic_0001>

<llo_original>
// kernel: tpu_custom_call.1
$region0: #{tpu_custom_call.1}
  #allocation0 [shape = 'u32[]', space=smem, size = 0x4, offset = 0x4, fixed_abs, tag = 'smem constant byte address 0x4 - core index']
  #allocation1 [shape = 'u32[144,128]{1,0:T(1,128)}', space=vmem, size = 0x12000, scoped, tag = 'internal scratch']
  %s0 = inlined_call_operand.hbm [shape: f32[150,128], index: 0, kind: input, shape index: {}]
  %s1 = inlined_call_operand.hbm [shape: bf16[128,128], index: 1, kind: input, shape index: {}]
  %s2 = inlined_call_operand.vmem [shape: f32[1,128], index: 2, kind: input, shape index: {}]
  %s3 = inlined_call_operand.hbm [shape: bf16[128,128], index: 3, kind: input, shape index: {}]
  %s4 = inlined_call_operand.vmem [shape: f32[1,128], index: 4, kind: input, shape index: {}]
  %s5 = inlined_call_operand.hbm [shape: f32[150,128], index: 5, kind: output, shape index: {}]
  %s6 = sld [smem:[#allocation0]]
  $region65: #{tpu_custom_call.1} parent=0
    _
  %s8 = ssub.s32 1, %s6
  %s9 = scalar_select 0, %s8, %s6
  $region1: #{tpu_custom_call.1} parent=0
    #allocation2 [shape = 'u8[81920]{0}', space=vmem, size = 0x14000, scoped, tag = 'input window, operand 0']
    #allocation3 [shape = 's32[2]{0}', space=sflag, size = 0x8, scoped, tag = 'scoped memory for tpu_custom_call.1']
    #allocation4 [shape = 's32[2]{0}', space=sflag, size = 0x8, scoped, tag = 'scoped memory for tpu_custom_call.1']
    #allocation5 [shape = 'u8[32768]{0}', space=vmem, size = 0x8000, scoped, tag = 'input window, operand 1, single buffered']
    #allocation6 [shape = 's32[1]{0}', space=sflag, size = 0x4, scoped, tag = 'scoped memory for tpu_custom_call.1']
    #allocation7 [shape = 'u8[32768]{0}', space=vmem, size = 0x8000, scoped, tag = 'input window, operand 3, single buffered']
    #allocation8 [shape = 'u8[81920]{0}', space=vmem, size = 0x14000, scoped, tag = 'output window, operand 0']
    %10 = vsyncpa [#allocation3], 0
    %s11 = scalar_lea.sflag [#allocation3], 1
    %12 = vsyncpa %s11, 0
    %13 = vsyncpa [#allocation6], 0
    %14 = vsyncpa [#allocation4], 0
    %s15 = scalar_lea.sflag [#allocation4], 1
    %16 = vsyncpa %s15, 0
    loop: start=0, step=1, limit=4
    $region2: #{tpu_custom_call.1} parent=1 // loop_pre_header
      _
    $region3: #{tpu_custom_call.1} parent=1 // loop_header
      %s18 = sphi 0, %s22
      %p19 = scmp.ge.s32.totalorder %s18, 4
      %s28 = sphi 0, %s30
      %s31 = sphi 0, %s28
      %s32 = sphi 0, %s31
      %s48 = sphi 0, %s32
      %s52 = sphi 0, %s52
      %s54 = sphi 0, %s52
      %s55 = sphi 0, %s54
      %s69 = sphi 0, %s55
      %s73 = sphi 0, %s73
      %s75 = sphi 0, %s73
      %s76 = sphi 0, %s75
      %s90 = sphi 0, %s76
      %s94 = sphi 0, %s94
      %s96 = sphi 0, %s94
      %s97 = sphi 0, %s96
      %s111 = sphi 0, %s97
      %s115 = sphi 0, %s115
      %s117 = sphi 0, %s115
      %s118 = sphi 0, %s117
      %s132 = sphi 0, %s118
      %s138 = sphi 0, %s140
      %s141 = sphi 0, %s138
      %s142 = sphi 0, %s141
      %s158 = sphi 0, %s142
    $region4: #{tpu_custom_call.1} parent=1 // loop_header_branch
      %21 = sbr.rel (%p19) target = $region8
    $region5: #{tpu_custom_call.1} parent=1 // loop_body
      %s23 = ssub.s32 %s18, 1
      %s24 = ssub.s32 %s18, 2
      %s25 = sadd.s32 %s18, 1
      %s26 = ssub.s32 %s18, %s25
      %p27 = scmp.eq.s32.totalorder %s26, 0
      %s29 = sadd.s32 %s28, 1
      %s30 = scalar_select %p27, %s28, %s29
      %p33 = pneg %p27
      %p34 = scmp.eq.s32.totalorder %s18, 1
      %p35 = por %p33, %p34
      %p36 = scmp.ne.s32.totalorder %s28, %s31
      %p37 = scmp.eq.s32.totalorder %s18, 0
      %p38 = por %p36, %p37
      %p39 = scmp.ne.s32.totalorder %s28, %s31
      %p40 = scmp.eq.s32.totalorder %s23, 1
      %p41 = por %p39, %p40
      %p42 = scmp.ne.s32.totalorder %s31, %s32
      %p43 = scmp.eq.s32.totalorder %s23, 0
      %p44 = por %p42, %p43
      %p45 = scmp.ne.s32.totalorder %s31, %s32
      %p46 = scmp.eq.s32.totalorder %s24, 1
      %p47 = por %p45, %p46
      %p49 = scmp.ne.s32.totalorder %s32, %s48
      %p50 = scmp.eq.s32.totalorder %s24, 0
      %p51 = por %p49, %p50
      %s53 = sadd.s32 %s52, 1
      %p56 = scmp.eq.s32.totalorder %s18, 1
      %p57 = scmp.ne.s32.totalorder %s52, %s54
      %p58 = scmp.eq.s32.totalorder %s18, 0
      %p59 = por %p57, %p58
      %p60 = scmp.ne.s32.totalorder %s52, %s54
      %p61 = scmp.eq.s32.totalorder %s23, 1
      %p62 = por %p60, %p61
      %p63 = scmp.ne.s32.totalorder %s54, %s55
      %p64 = scmp.eq.s32.totalorder %s23, 0
      %p65 = por %p63, %p64
      %p66 = scmp.ne.s32.totalorder %s54, %s55
      %p67 = scmp.eq.s32.totalorder %s24, 1
      %p68 = por %p66, %p67
      %p70 = scmp.ne.s32.totalorder %s55, %s69
      %p71 = scmp.eq.s32.totalorder %s24, 0
      %p72 = por %p70, %p71
      %s74 = sadd.s32 %s73, 1
      %p77 = scmp.eq.s32.totalorder %s18, 1
      %p78 = scmp.ne.s32.totalorder %s73, %s75
      %p79 = scmp.eq.s32.totalorder %s18, 0
      %p80 = por %p78, %p79
      %p81 = scmp.ne.s32.totalorder %s73, %s75
      %p82 = scmp.eq.s32.totalorder %s23, 1
      %p83 = por %p81, %p82
      %p84 = scmp.ne.s32.totalorder %s75, %s76
      %p85 = scmp.eq.s32.totalorder %s23, 0
      %p86 = por %p84, %p85
      %p87 = scmp.ne.s32.totalorder %s75, %s76
      %p88 = scmp.eq.s32.totalorder %s24, 1
      %p89 = por %p87, %p88
      %p91 = scmp.ne.s32.totalorder %s76, %s90
      %p92 = scmp.eq.s32.totalorder %s24, 0
      %p93 = por %p91, %p92
      %s95 = sadd.s32 %s94, 1
      %p98 = scmp.eq.s32.totalorder %s18, 1
      %p99 = scmp.ne.s32.totalorder %s94, %s96
      %p100 = scmp.eq.s32.totalorder %s18, 0
      %p101 = por %p99, %p100
      %p102 = scmp.ne.s32.totalorder %s94, %s96
      %p103 = scmp.eq.s32.totalorder %s23, 1
      %p104 = por %p102, %p103
      %p105 = scmp.ne.s32.totalorder %s96, %s97
      %p106 = scmp.eq.s32.totalorder %s23, 0
      %p107 = por %p105, %p106
      %p108 = scmp.ne.s32.totalorder %s96, %s97
      %p109 = scmp.eq.s32.totalorder %s24, 1
      %p110 = por %p108, %p109
      %p112 = scmp.ne.s32.totalorder %s97, %s111
      %p113 = scmp.eq.s32.totalorder %s24, 0
      %p114 = por %p112, %p113
      %s116 = sadd.s32 %s115, 1
      %p119 = scmp.eq.s32.totalorder %s18, 1
      %p120 = scmp.ne.s32.totalorder %s115, %s117
      %p121 = scmp.eq.s32.totalorder %s18, 0
      %p122 = por %p120, %p121
      %p123 = scmp.ne.s32.totalorder %s115, %s117
      %p124 = scmp.eq.s32.totalorder %s23, 1
      %p125 = por %p123, %p124
      %p126 = scmp.ne.s32.totalorder %s117, %s118
      %p127 = scmp.eq.s32.totalorder %s23, 0
      %p128 = por %p126, %p127
      %p129 = scmp.ne.s32.totalorder %s117, %s118
      %p130 = scmp.eq.s32.totalorder %s24, 1
      %p131 = por %p129, %p130
      %p133 = scmp.ne.s32.totalorder %s118, %s132
      %p134 = scmp.eq.s32.totalorder %s24, 0
      %p135 = por %p133, %p134
      %s136 = ssub.s32 %s18, %s25
      %p137 = scmp.eq.s32.totalorder %s136, 0
      %s139 = sadd.s32 %s138, 1
      %s140 = scalar_select %p137, %s138, %s139
      %p143 = pneg %p137
      %p144 = scmp.eq.s32.totalorder %s18, 1
      %p145 = por %p143, %p144
      %p146 = scmp.ne.s32.totalorder %s138, %s141
      %p147 = scmp.eq.s32.totalorder %s18, 0
      %p148 = por %p146, %p147
      %p149 = scmp.ne.s32.totalorder %s138, %s141
      %p150 = scmp.eq.s32.totalorder %s23, 1
      %p151 = por %p149, %p150
      %p152 = scmp.ne.s32.totalorder %s141, %s142
      %p153 = scmp.eq.s32.totalorder %s23, 0
      %p154 = por %p152, %p153
      %p155 = scmp.ne.s32.totalorder %s141, %s142
      %p156 = scmp.eq.s32.totalorder %s24, 1
      %p157 = por %p155, %p156
      %p159 = scmp.ne.s32.totalorder %s142, %s158
      %p160 = scmp.eq.s32.totalorder %s24, 0
      %p161 = por %p159, %p160
      %p162 = scmp.le.s32.totalorder 1, %s18
      %p163 = scmp.lt.s32.totalorder %s18, 3
      %p164 = pnand %p162, %p163
      %p165 = pneg %p164
      // Predicated region
      $region9: #{tpu_custom_call.1} parent=5 // pred_check
        _
      $region10: #{tpu_custom_call.1} parent=5 // pred_check_branch
        %167 = sbr.rel (%p164) target = $region12
      $region11: #{tpu_custom_call.1} parent=5 // pred_region
        %s168 = ssub.s32 %s18, 1
        // Predicated region
        $region13: #{tpu_custom_call.1} parent=11 // pred_check
          %p169 = pneg %p65
        $region14: #{tpu_custom_call.1} parent=11 // pred_check_branch
          %171 = sbr.rel (%p169) target = $region16
        $region15: #{tpu_custom_call.1} parent=11 // pred_region
          %s173 = ssub.s32 1024, 1024
          %174 = vsyncadd [#allocation6], %s173
          %s175 = sshll.u32 [#allocation5], 4
          %s176 = int_to_ptr.vmem [resolvable:$true] %s175
          %181 = dma.hbm_to_vmem [thread:$0]  %s1, 1024, %s176, [#allocation6], 64, 64, 4
        $region16: #{tpu_custom_call.1} parent=11 // pred_fallthru
          _
        // Predicated region
        $region17: #{tpu_custom_call.1} parent=11 // pred_check
          %p182 = pneg %p86
        $region18: #{tpu_custom_call.1} parent=11 // pred_check_branch
          %184 = sbr.rel (%p182) target = $region20
        $region19: #{tpu_custom_call.1} parent=11 // pred_region
          _
        $region20: #{tpu_custom_call.1} parent=11 // pred_fallthru
          _
        // Predicated region
        $region21: #{tpu_custom_call.1} parent=11 // pred_check
          %p185 = pneg %p107
        $region22: #{tpu_custom_call.1} parent=11 // pred_check_branch
          %187 = sbr.rel (%p185) target = $region24
        $region23: #{tpu_custom_call.1} parent=11 // pred_region
          %s189 = ssub.s32 1024, 1024
          %190 = vsyncadd [#allocation6], %s189
          %s191 = sshll.u32 [#allocation7], 4
          %s192 = int_to_ptr.vmem [resolvable:$true] %s191
          %197 = dma.hbm_to_vmem [thread:$0]  %s3, 1024, %s192, [#allocation6], 64, 64, 4
        $region24: #{tpu_custom_call.1} parent=11 // pred_fallthru
          _
        // Predicated region
        $region25: #{tpu_custom_call.1} parent=11 // pred_check
          %p198 = pneg %p128
        $region26: #{tpu_custom_call.1} parent=11 // pred_check_branch
          %200 = sbr.rel (%p198) target = $region28
        $region27: #{tpu_custom_call.1} parent=11 // pred_region
          _
        $region28: #{tpu_custom_call.1} parent=11 // pred_fallthru
          _
      $region12: #{tpu_custom_call.1} parent=5 // pred_fallthru
        _
      %p201 = scmp.lt.s32.totalorder %s18, 2
      // Predicated region
      $region29: #{tpu_custom_call.1} parent=5 // pred_check
        %p202 = pneg %p201
      $region30: #{tpu_custom_call.1} parent=5 // pred_check_branch
        %204 = sbr.rel (%p202) target = $region32
      $region31: #{tpu_custom_call.1} parent=5 // pred_region
        // Predicated region
        $region33: #{tpu_custom_call.1} parent=31 // pred_check
          %p205 = pneg %p38
        $region34: #{tpu_custom_call.1} parent=31 // pred_check_branch
          %207 = sbr.rel (%p205) target = $region36
        $region35: #{tpu_custom_call.1} parent=31 // pred_region
          %s208 = sand.u32 %s28, 1
          %s209 = scalar_lea.sflag [#allocation3], %s208
          %s210 = sand.u32 %s28, 1
          %s211 = smul.addr %s210, 80
          %s212 = scalar_lea.vmem [#allocation2], %s211
          %s213 = smul.u32 10, %s18
          %s214 = ssub.s32 19, %s213
          %p215 = scmp.lt.s32.totalorder %s214, 10
          %s216 = scalar_select %p215, %s214, 10
          %s217 = smul.u32 128, %s216
          %s219 = ssub.s32 1280, %s217
          %220 = vsyncadd %s209, %s219
          %p221 = scmp.ne.s32.totalorder 0, %s217
          %s222 = smul.addr %s213, 128
          %s223 = scalar_lea.hbm %s0, %s222
          %s224 = smul.u32 8, %s216
          %s225 = sshll.u32 %s212, 4
          %s226 = int_to_ptr.vmem [resolvable:$true] %s225
          %s227 = sshll.u32 %s224, 4
          %231 = dma.hbm_to_vmem [thread:$0]  (%p221), %s223, %s227, %s226, %s209, 128, 128, 8
        $region36: #{tpu_custom_call.1} parent=31 // pred_fallthru
          _
      $region32: #{tpu_custom_call.1} parent=5 // pred_fallthru
        _
      %p232 = scmp.le.s32.totalorder 1, %s18
      %p233 = scmp.lt.s32.totalorder %s18, 3
      %p234 = pnand %p232, %p233
      %p235 = pneg %p234
      // Predicated region
      $region37: #{tpu_custom_call.1} parent=5 // pred_check
        _
      $region38: #{tpu_custom_call.1} parent=5 // pred_check_branch
        %237 = sbr.rel (%p234) target = $region40
      $region39: #{tpu_custom_call.1} parent=5 // pred_region
        %s238 = ssub.s32 %s18, 1
        %s239 = sand.u32 %s31, 1
        %s240 = scalar_lea.sflag [#allocation3], %s239
        %s241 = sand.u32 %s31, 1
        %s242 = smul.addr %s241, 80
        %s243 = scalar_lea.vmem [#allocation2], %s242
        // Predicated region
        $region41: #{tpu_custom_call.1} parent=39 // pred_check
          %p244 = pneg %p44
        $region42: #{tpu_custom_call.1} parent=39 // pred_check_branch
          %246 = sbr.rel (%p244) target = $region44
        $region43: #{tpu_custom_call.1} parent=39 // pred_region
          %247 = dma.done %s240, 1280
        $region44: #{tpu_custom_call.1} parent=39 // pred_fallthru
          _
        // Predicated region
        $region45: #{tpu_custom_call.1} parent=39 // pred_check
          %p248 = pneg %p65
        $region46: #{tpu_custom_call.1} parent=39 // pred_check_branch
          %250 = sbr.rel (%p248) target = $region48
        $region47: #{tpu_custom_call.1} parent=39 // pred_region
          %251 = dma.done [#allocation6], 1024
        $region48: #{tpu_custom_call.1} parent=39 // pred_fallthru
          _
        // Predicated region
        $region49: #{tpu_custom_call.1} parent=39 // pred_check
          %p252 = pneg %p107
        $region50: #{tpu_custom_call.1} parent=39 // pred_check_branch
          %254 = sbr.rel (%p252) target = $region52
        $region51: #{tpu_custom_call.1} parent=39 // pred_region
          %255 = dma.done [#allocation6], 1024
        $region52: #{tpu_custom_call.1} parent=39 // pred_fallthru
          _
        %s256 = sand.u32 %s31, 1
        %s257 = scalar_lea.sflag [#allocation3], %s256
        %s258 = sand.u32 %s31, 1
        %s259 = smul.addr %s258, 80
        %s260 = scalar_lea.vmem [#allocation2], %s259
        %p261 = pneg %p44
        %p262 = pneg %p41
        %p263 = pneg %p65
        %p264 = pneg %p62
        %p265 = pneg %p86
        %p266 = pneg %p83
        %p267 = pneg %p107
        %p268 = pneg %p104
        %p269 = pneg %p128
        %p270 = pneg %p125
        %p271 = pneg %p154
        %p272 = pneg %p151
        %s273 = sand.u32 %s141, 1
        %s274 = scalar_lea.sflag [#allocation4], %s273
        %s275 = sand.u32 %s141, 1
        %s276 = smul.addr %s275, 80
        %s277 = scalar_lea.vmem [#allocation8], %s276
        %s278 = smul.u32 10, %s23
        %s279 = ssub.s32 19, %s278
        %p280 = scmp.lt.s32.totalorder %s279, 10
        %s281 = scalar_select %p280, %s279, 10
        %s282 = smul.u32 128, %s281
        %s283 = smul.u32 10, %s23
        %s284 = ssub.s32 19, %s283
        %p285 = scmp.lt.s32.totalorder %s284, 10
        %s286 = scalar_select %p285, %s284, 10
        %s287 = smul.u32 128, %s286
        %v289 = vld [vmem:[%s243] sm:$0xff]
        %v290 = vld [vmem:[%s243 + $0x8] sm:$0xff]
        %v291 = vld [vmem:[%s243 + $0x10] sm:$0xff]
        %v292 = vld [vmem:[%s243 + $0x18] sm:$0xff]
        %v293 = vld [vmem:[%s243 + $0x20] sm:$0xff]
        %v294 = vld [vmem:[%s243 + $0x28] sm:$0xff]
        %v295 = vld [vmem:[%s243 + $0x30] sm:$0xff]
        %v296 = vld [vmem:[%s243 + $0x38] sm:$0xff]
        %v297 = vld [vmem:[%s243 + $0x40] sm:$0xff]
        %v298 = vld [vmem:[%s243 + $0x48] sm:$0xff]
        %v299 = vpack.c.bf16 %v290, %v289
        %v300 = vpack.c.bf16 %v292, %v291
        %v301 = vpack.c.bf16 %v294, %v293
        %v302 = vpack.c.bf16 %v296, %v295
        %v303 = vpack.c.bf16 %v298, %v297
        %v304 = vld [vmem:[#allocation5] sm:$0xf]
        %v305 = vld [vmem:[#allocation5 + $0x4] sm:$0xf]
        %v306 = vld [vmem:[#allocation5 + $0x8] sm:$0xf]
        %v307 = vld [vmem:[#allocation5 + $0xc] sm:$0xf]
        %v308 = vld [vmem:[#allocation5 + $0x10] sm:$0xf]
        %v309 = vld [vmem:[#allocation5 + $0x14] sm:$0xf]
        %v310 = vld [vmem:[#allocation5 + $0x18] sm:$0xf]
        %v311 = vld [vmem:[#allocation5 + $0x1c] sm:$0xf]
        %v312 = vld [vmem:[#allocation5 + $0x20] sm:$0xf]
        %v313 = vld [vmem:[#allocation5 + $0x24] sm:$0xf]
        %v314 = vld [vmem:[#allocation5 + $0x28] sm:$0xf]
        %v315 = vld [vmem:[#allocation5 + $0x2c] sm:$0xf]
        %v316 = vld [vmem:[#allocation5 + $0x30] sm:$0xf]
        %v317 = vld [vmem:[#allocation5 + $0x34] sm:$0xf]
        %v318 = vld [vmem:[#allocation5 + $0x38] sm:$0xf]
        %v319 = vld [vmem:[#allocation5 + $0x3c] sm:$0xf]
        %v320 = vld [vmem:[%s2] sm:$0x1]
        %v322 = vlaneseq
        %v323 = vshrl.u32 %v322, 7
        %v324 = vsub.s32 0, %v323
        %v325 = vrot.slane %v320, %v324
        %v343 = vunpack.c.l.b16 %v304
        %v344 = vunpack.c.l.b16 %v305
        %v345 = vunpack.c.l.b16 %v306
        %v346 = vunpack.c.l.b16 %v307
        %v347 = vunpack.c.l.b16 %v308
        %v348 = vunpack.c.l.b16 %v309
        %v349 = vunpack.c.l.b16 %v310
        %v350 = vunpack.c.l.b16 %v311
        %v351 = vunpack.c.l.b16 %v312
        %v352 = vunpack.c.l.b16 %v313
        %v353 = vunpack.c.l.b16 %v314
        %v354 = vunpack.c.l.b16 %v315
        %v355 = vunpack.c.l.b16 %v316
        %v356 = vunpack.c.l.b16 %v317
        %v357 = vunpack.c.l.b16 %v318
        %v358 = vunpack.c.l.b16 %v319
        %v359 = vpack.c.b16 %v344, %v343
        %v360 = vpack.c.b16 %v346, %v345
        %v361 = vpack.c.b16 %v348, %v347
        %v362 = vpack.c.b16 %v350, %v349
        %v363 = vpack.c.b16 %v352, %v351
        %v364 = vpack.c.b16 %v354, %v353
        %v365 = vpack.c.b16 %v356, %v355
        %v366 = vpack.c.b16 %v358, %v357
        %375 = vmatprep.subr.bf16.mxu0 0
        %376 = vmatpush1.bf16.msra.mxu0 %v359
        %377 = vmatprep.subr.bf16.mxu0 0
        %378 = vmatpush1.bf16.msra.mxu0 %v360
        %379 = vmatprep.subr.bf16.mxu0 0
        %380 = vmatpush1.bf16.msra.mxu0 %v361
        %381 = vmatprep.subr.bf16.mxu0 0
        %382 = vmatpush1.bf16.msra.mxu0 %v362
        %383 = vmatprep.subr.bf16.mxu0 0
        %384 = vmatpush1.bf16.msra.mxu0 %v363
        %385 = vmatprep.subr.bf16.mxu0 0
        %386 = vmatpush1.bf16.msra.mxu0 %v364
        %387 = vmatprep.subr.bf16.mxu0 0
        %388 = vmatpush1.bf16.msra.mxu0 %v365
        %389 = vmatprep.subr.bf16.mxu0 0
        %390 = vmatpush1.bf16.msra.mxu0 %v366
        %391 = vmatprep.subr.bf16.mxu0 0
        %392 = vmatpush1.bf16.msra.mxu0 0
        %393 = vmatprep.subr.bf16.mxu0 0
        %394 = vmatpush1.bf16.msra.mxu0 0
        %395 = vmatprep.subr.bf16.mxu0 0
        %396 = vmatpush1.bf16.msra.mxu0 0
        %397 = vmatprep.subr.bf16.mxu0 0
        %398 = vmatpush1.bf16.msra.mxu0 0
        %399 = vmatprep.subr.bf16.mxu0 0
        %400 = vmatpush1.bf16.msra.mxu0 0
        %401 = vmatprep.subr.bf16.mxu0 0
        %402 = vmatpush1.bf16.msra.mxu0 0
        %403 = vmatprep.subr.bf16.mxu0 0
        %404 = vmatpush1.bf16.msra.mxu0 0
        %405 = vmatprep.subr.bf16.mxu0 0
        %406 = vmatpush1.bf16.msra.mxu0 0
        %407 = vmatprep.mubr.bf16.mxu0 0
        %408 = vmatmul.mubr.bf16.gmra.mrb[0].mxu0 %v299
        %v409 = vpop.f32.mrb[0].mxu0
        %v410 = vadd.f32 %v325, %v409
        %v411 = vpop.f32.mrb[0].mxu0
        %v412 = vpop.f32.mrb[0].mxu0
        %v413 = vadd.f32 %v325, %v412
        %v414 = vpop.f32.mrb[0].mxu0
        %415 = vmatprep.mubr.bf16.mxu0 0
        %416 = vmatmul.mubr.bf16.gmra.mrb[0].mxu0 %v300
        %v417 = vpop.f32.mrb[0].mxu0
        %v418 = vadd.f32 %v325, %v417
        %v419 = vpop.f32.mrb[0].mxu0
        %v420 = vpop.f32.mrb[0].mxu0
        %v421 = vadd.f32 %v325, %v420
        %v422 = vpop.f32.mrb[0].mxu0
        %423 = vmatprep.mubr.bf16.mxu0 0
        %424 = vmatmul.mubr.bf16.gmra.mrb[0].mxu0 %v301
        %v425 = vpop.f32.mrb[0].mxu0
        %v426 = vadd.f32 %v325, %v425
        %v427 = vpop.f32.mrb[0].mxu0
        %v428 = vpop.f32.mrb[0].mxu0
        %v429 = vadd.f32 %v325, %v428
        %v430 = vpop.f32.mrb[0].mxu0
        %431 = vmatprep.mubr.bf16.mxu0 0
        %432 = vmatmul.mubr.bf16.gmra.mrb[0].mxu0 %v302
        %v433 = vpop.f32.mrb[0].mxu0
        %v434 = vadd.f32 %v325, %v433
        %v435 = vpop.f32.mrb[0].mxu0
        %v436 = vpop.f32.mrb[0].mxu0
        %v437 = vadd.f32 %v325, %v436
        %v438 = vpop.f32.mrb[0].mxu0
        %439 = vmatprep.mubr.bf16.mxu0 0
        %440 = vmatmul.mubr.bf16.gmra.mrb[0].mxu0 %v303
        %v441 = vpop.f32.mrb[0].mxu0
        %v442 = vadd.f32 %v325, %v441
        %v443 = vpop.f32.mrb[0].mxu0
        %v444 = vpop.f32.mrb[0].mxu0
        %v445 = vadd.f32 %v325, %v444
        %v446 = vpop.f32.mrb[0].mxu0
        %447 = vdwg.mxu0
        %vm448 = vcmp.ge.f32.partialorder %v410, 0.0
        %vm449 = vcmp.ge.f32.partialorder %v413, 0.0
        %vm450 = vcmp.ge.f32.partialorder %v418, 0.0
        %vm451 = vcmp.ge.f32.partialorder %v421, 0.0
        %vm452 = vcmp.ge.f32.partialorder %v426, 0.0
        %vm453 = vcmp.ge.f32.partialorder %v429, 0.0
        %vm454 = vcmp.ge.f32.partialorder %v434, 0.0
        %vm455 = vcmp.ge.f32.partialorder %v437, 0.0
        %vm456 = vcmp.ge.f32.partialorder %v442, 0.0
        %vm457 = vcmp.ge.f32.partialorder %v445, 0.0
        %v458 = vmul.f32 %v410, 0.2
        %v459 = vmul.f32 %v413, 0.2
        %v460 = vmul.f32 %v418, 0.2
        %v461 = vmul.f32 %v421, 0.2
        %v462 = vmul.f32 %v426, 0.2
        %v463 = vmul.f32 %v429, 0.2
        %v464 = vmul.f32 %v434, 0.2
        %v465 = vmul.f32 %v437, 0.2
        %v466 = vmul.f32 %v442, 0.2
        %v467 = vmul.f32 %v445, 0.2
        %v468 = vsel %vm448, %v410, %v458
        %v469 = vsel %vm449, %v413, %v459
        %v470 = vsel %vm450, %v418, %v460
        %v471 = vsel %vm451, %v421, %v461
        %v472 = vsel %vm452, %v426, %v462
        %v473 = vsel %vm453, %v429, %v463
        %v474 = vsel %vm454, %v434, %v464
        %v475 = vsel %vm455, %v437, %v465
        %v476 = vsel %vm456, %v442, %v466
        %v477 = vsel %vm457, %v445, %v467
        %v478 = vpack.c.bf16 %v469, %v468
        %v479 = vpack.c.bf16 %v471, %v470
        %v480 = vpack.c.bf16 %v473, %v472
        %v481 = vpack.c.bf16 %v475, %v474
        %v482 = vpack.c.bf16 %v477, %v476
        %v483 = vld [vmem:[#allocation7] sm:$0xf]
        %v484 = vld [vmem:[#allocation7 + $0x4] sm:$0xf]
        %v485 = vld [vmem:[#allocation7 + $0x8] sm:$0xf]
        %v486 = vld [vmem:[#allocation7 + $0xc] sm:$0xf]
        %v487 = vld [vmem:[#allocation7 + $0x10] sm:$0xf]
        %v488 = vld [vmem:[#allocation7 + $0x14] sm:$0xf]
        %v489 = vld [vmem:[#allocation7 + $0x18] sm:$0xf]
        %v490 = vld [vmem:[#allocation7 + $0x1c] sm:$0xf]
        %v491 = vld [vmem:[#allocation7 + $0x20] sm:$0xf]
        %v492 = vld [vmem:[#allocation7 + $0x24] sm:$0xf]
        %v493 = vld [vmem:[#allocation7 + $0x28] sm:$0xf]
        %v494 = vld [vmem:[#allocation7 + $0x2c] sm:$0xf]
        %v495 = vld [vmem:[#allocation7 + $0x30] sm:$0xf]
        %v496 = vld [vmem:[#allocation7 + $0x34] sm:$0xf]
        %v497 = vld [vmem:[#allocation7 + $0x38] sm:$0xf]
        %v498 = vld [vmem:[#allocation7 + $0x3c] sm:$0xf]
        %v499 = vld [vmem:[%s4] sm:$0x1]
        %v501 = vlaneseq
        %v502 = vshrl.u32 %v501, 7
        %v503 = vsub.s32 0, %v502
        %v504 = vrot.slane %v499, %v503
        %v522 = vunpack.c.l.b16 %v483
        %v523 = vunpack.c.l.b16 %v484
        %v524 = vunpack.c.l.b16 %v485
        %v525 = vunpack.c.l.b16 %v486
        %v526 = vunpack.c.l.b16 %v487
        %v527 = vunpack.c.l.b16 %v488
        %v528 = vunpack.c.l.b16 %v489
        %v529 = vunpack.c.l.b16 %v490
        %v530 = vunpack.c.l.b16 %v491
        %v531 = vunpack.c.l.b16 %v492
        %v532 = vunpack.c.l.b16 %v493
        %v533 = vunpack.c.l.b16 %v494
        %v534 = vunpack.c.l.b16 %v495
        %v535 = vunpack.c.l.b16 %v496
        %v536 = vunpack.c.l.b16 %v497
        %v537 = vunpack.c.l.b16 %v498
        %v538 = vpack.c.b16 %v523, %v522
        %v539 = vpack.c.b16 %v525, %v524
        %v540 = vpack.c.b16 %v527, %v526
        %v541 = vpack.c.b16 %v529, %v528
        %v542 = vpack.c.b16 %v531, %v530
        %v543 = vpack.c.b16 %v533, %v532
        %v544 = vpack.c.b16 %v535, %v534
        %v545 = vpack.c.b16 %v537, %v536
        %554 = vmatprep.subr.bf16.mxu0 0
        %555 = vmatpush1.bf16.msra.mxu0 %v538
        %556 = vmatprep.subr.bf16.mxu0 0
        %557 = vmatpush1.bf16.msra.mxu0 %v539
        %558 = vmatprep.subr.bf16.mxu0 0
        %559 = vmatpush1.bf16.msra.mxu0 %v540
        %560 = vmatprep.subr.bf16.mxu0 0
        %561 = vmatpush1.bf16.msra.mxu0 %v541
        %562 = vmatprep.subr.bf16.mxu0 0
        %563 = vmatpush1.bf16.msra.mxu0 %v542
        %564 = vmatprep.subr.bf16.mxu0 0
        %565 = vmatpush1.bf16.msra.mxu0 %v543
        %566 = vmatprep.subr.bf16.mxu0 0
        %567 = vmatpush1.bf16.msra.mxu0 %v544
        %568 = vmatprep.subr.bf16.mxu0 0
        %569 = vmatpush1.bf16.msra.mxu0 %v545
        %570 = vmatprep.subr.bf16.mxu0 0
        %571 = vmatpush1.bf16.msra.mxu0 0
        %572 = vmatprep.subr.bf16.mxu0 0
        %573 = vmatpush1.bf16.msra.mxu0 0
        %574 = vmatprep.subr.bf16.mxu0 0
        %575 = vmatpush1.bf16.msra.mxu0 0
        %576 = vmatprep.subr.bf16.mxu0 0
        %577 = vmatpush1.bf16.msra.mxu0 0
        %578 = vmatprep.subr.bf16.mxu0 0
        %579 = vmatpush1.bf16.msra.mxu0 0
        %580 = vmatprep.subr.bf16.mxu0 0
        %581 = vmatpush1.bf16.msra.mxu0 0
        %582 = vmatprep.subr.bf16.mxu0 0
        %583 = vmatpush1.bf16.msra.mxu0 0
        %584 = vmatprep.subr.bf16.mxu0 0
        %585 = vmatpush1.bf16.msra.mxu0 0
        %586 = vmatprep.mubr.bf16.mxu0 0
        %587 = vmatmul.mubr.bf16.gmra.mrb[0].mxu0 %v478
        %v588 = vpop.f32.mrb[0].mxu0
        %v589 = vadd.f32 %v504, %v588
        %v590 = vpop.f32.mrb[0].mxu0
        %v591 = vpop.f32.mrb[0].mxu0
        %v592 = vadd.f32 %v504, %v591
        %v593 = vpop.f32.mrb[0].mxu0
        %594 = vmatprep.mubr.bf16.mxu0 0
        %595 = vmatmul.mubr.bf16.gmra.mrb[0].mxu0 %v479
        %v596 = vpop.f32.mrb[0].mxu0
        %v597 = vadd.f32 %v504, %v596
        %v598 = vpop.f32.mrb[0].mxu0
        %v599 = vpop.f32.mrb[0].mxu0
        %v600 = vadd.f32 %v504, %v599
        %v601 = vpop.f32.mrb[0].mxu0
        %602 = vmatprep.mubr.bf16.mxu0 0
        %603 = vmatmul.mubr.bf16.gmra.mrb[0].mxu0 %v480
        %v604 = vpop.f32.mrb[0].mxu0
        %v605 = vadd.f32 %v504, %v604
        %v606 = vpop.f32.mrb[0].mxu0
        %v607 = vpop.f32.mrb[0].mxu0
        %v608 = vadd.f32 %v504, %v607
        %v609 = vpop.f32.mrb[0].mxu0
        %610 = vmatprep.mubr.bf16.mxu0 0
        %611 = vmatmul.mubr.bf16.gmra.mrb[0].mxu0 %v481
        %v612 = vpop.f32.mrb[0].mxu0
        %v613 = vadd.f32 %v504, %v612
        %v614 = vpop.f32.mrb[0].mxu0
        %v615 = vpop.f32.mrb[0].mxu0
        %v616 = vadd.f32 %v504, %v615
        %v617 = vpop.f32.mrb[0].mxu0
        %618 = vmatprep.mubr.bf16.mxu0 0
        %619 = vmatmul.mubr.bf16.gmra.mrb[0].mxu0 %v482
        %v620 = vpop.f32.mrb[0].mxu0
        %v621 = vadd.f32 %v504, %v620
        %v622 = vpop.f32.mrb[0].mxu0
        %v623 = vpop.f32.mrb[0].mxu0
        %v624 = vadd.f32 %v504, %v623
        %v625 = vpop.f32.mrb[0].mxu0
        %626 = vdwg.mxu0
        %v627 = vadd.f32 %v589, %v289
        %v628 = vadd.f32 %v592, %v290
        %v629 = vadd.f32 %v597, %v291
        %v630 = vadd.f32 %v600, %v292
        %v631 = vadd.f32 %v605, %v293
        %v632 = vadd.f32 %v608, %v294
        %v633 = vadd.f32 %v613, %v295
        %v634 = vadd.f32 %v616, %v296
        %v635 = vadd.f32 %v621, %v297
        %v636 = vadd.f32 %v624, %v298
        %vm637 = vcmp.ge.f32.partialorder %v627, 0.0
        %vm638 = vcmp.ge.f32.partialorder %v628, 0.0
        %vm639 = vcmp.ge.f32.partialorder %v629, 0.0
        %vm640 = vcmp.ge.f32.partialorder %v630, 0.0
        %vm641 = vcmp.ge.f32.partialorder %v631, 0.0
        %vm642 = vcmp.ge.f32.partialorder %v632, 0.0
        %vm643 = vcmp.ge.f32.partialorder %v633, 0.0
        %vm644 = vcmp.ge.f32.partialorder %v634, 0.0
        %vm645 = vcmp.ge.f32.partialorder %v635, 0.0
        %vm646 = vcmp.ge.f32.partialorder %v636, 0.0
        %v647 = vmul.f32 %v627, 0.2
        %v648 = vmul.f32 %v628, 0.2
        %v649 = vmul.f32 %v629, 0.2
        %v650 = vmul.f32 %v630, 0.2
        %v651 = vmul.f32 %v631, 0.2
        %v652 = vmul.f32 %v632, 0.2
        %v653 = vmul.f32 %v633, 0.2
        %v654 = vmul.f32 %v634, 0.2
        %v655 = vmul.f32 %v635, 0.2
        %v656 = vmul.f32 %v636, 0.2
        %v657 = vsel %vm637, %v627, %v647
        %v658 = vsel %vm638, %v628, %v648
        %v659 = vsel %vm639, %v629, %v649
        %v660 = vsel %vm640, %v630, %v650
        %v661 = vsel %vm641, %v631, %v651
        %v662 = vsel %vm642, %v632, %v652
        %v663 = vsel %vm643, %v633, %v653
        %v664 = vsel %vm644, %v634, %v654
        %v665 = vsel %vm645, %v635, %v655
        %v666 = vsel %vm646, %v636, %v656
        %667 = vst [vmem:[%s277] sm:$0xff] %v657
        %668 = vst [vmem:[%s277 + $0x8] sm:$0xff] %v658
        %669 = vst [vmem:[%s277 + $0x10] sm:$0xff] %v659
        %670 = vst [vmem:[%s277 + $0x18] sm:$0xff] %v660
        %671 = vst [vmem:[%s277 + $0x20] sm:$0xff] %v661
        %672 = vst [vmem:[%s277 + $0x28] sm:$0xff] %v662
        %673 = vst [vmem:[%s277 + $0x30] sm:$0xff] %v663
        %674 = vst [vmem:[%s277 + $0x38] sm:$0xff] %v664
        %675 = vst [vmem:[%s277 + $0x40] sm:$0xff] %v665
        %676 = vst [vmem:[%s277 + $0x48] sm:$0xff] %v666
        %s677 = sand.u32 %s141, 1
        %s678 = scalar_lea.sflag [#allocation4], %s677
        %s679 = sand.u32 %s141, 1
        %s680 = smul.addr %s679, 80
        %s681 = scalar_lea.vmem [#allocation8], %s680
        // Predicated region
        $region53: #{tpu_custom_call.1} parent=39 // pred_check
          %p682 = pneg %p151
        $region54: #{tpu_custom_call.1} parent=39 // pred_check_branch
          %684 = sbr.rel (%p682) target = $region56
        $region55: #{tpu_custom_call.1} parent=39 // pred_region
          %s685 = smul.u32 10, %s23
          %s686 = ssub.s32 19, %s685
          %p687 = scmp.lt.s32.totalorder %s686, 10
          %s688 = scalar_select %p687, %s686, 10
          %s689 = smul.u32 128, %s688
          %s691 = ssub.s32 1280, %s689
          %692 = vsyncadd %s678, %s691
          %p693 = scmp.ne.s32.totalorder 0, %s689
          %s694 = smul.addr %s685, 128
          %s695 = scalar_lea.hbm %s5, %s694
          %s696 = smul.u32 8, %s688
          %s697 = sshll.u32 %s681, 4
          %s698 = int_to_ptr.vmem [resolvable:$true] %s697
          %s699 = sshll.u32 %s696, 4
          %703 = dma.vmem_to_hbm [thread:$0]  (%p693), %s698, %s699, %s695, %s678, 128, 128, 8
        $region56: #{tpu_custom_call.1} parent=39 // pred_fallthru
          _
      $region40: #{tpu_custom_call.1} parent=5 // pred_fallthru
        _
      %p704 = scmp.le.s32.totalorder 2, %s18
      // Predicated region
      $region57: #{tpu_custom_call.1} parent=5 // pred_check
        %p705 = pneg %p704
      $region58: #{tpu_custom_call.1} parent=5 // pred_check_branch
        %707 = sbr.rel (%p705) target = $region60
      $region59: #{tpu_custom_call.1} parent=5 // pred_region
        %s708 = ssub.s32 %s18, 2
        // Predicated region
        $region61: #{tpu_custom_call.1} parent=59 // pred_check
          %p709 = pneg %p157
        $region62: #{tpu_custom_call.1} parent=59 // pred_check_branch
          %711 = sbr.rel (%p709) target = $region64
        $region63: #{tpu_custom_call.1} parent=59 // pred_region
          %s712 = sand.u32 %s142, 1
          %s713 = scalar_lea.sflag [#allocation4], %s712
          %s714 = sand.u32 %s142, 1
          %s715 = smul.addr %s714, 80
          %s716 = scalar_lea.vmem [#allocation8], %s715
          %717 = dma.done %s713, 1280
        $region64: #{tpu_custom_call.1} parent=59 // pred_fallthru
          _
      $region60: #{tpu_custom_call.1} parent=5 // pred_fallthru
        _
    $region6: #{tpu_custom_call.1} parent=1 // loop_footer
      %s22 = sadd.s32 1, %s18
    $region7: #{tpu_custom_call.1} parent=1 // loop_footer_branch
      %17 = sbr.rel target = $region3
    $region8: #{tpu_custom_call.1} parent=1 // loop_exit
      _
    %718 = vsyncpa [#allocation3], 1
    %s719 = scalar_lea.sflag [#allocation3], 1
    %720 = vsyncpa %s719, 1
    %721 = vsyncpa [#allocation6], 1
    %722 = vsyncpa [#allocation4], 1
    %s723 = scalar_lea.sflag [#allocation4], 1
    %724 = vsyncpa %s723, 1

</llo_original>
